<compile_context>
chip_gen: v7x
topology: tpu7x:2x2x1
jax: 0.10.0
libtpu: 0.0.40
codegen_flags: <defaults>
</compile_context>

<pallas_src>
import functools

import jax
import jax.numpy as jnp
import numpy as np
from jax import lax
from jax.experimental import pallas as pl
from jax.experimental.pallas import tpu as pltpu


# ---------------------------------------------------------------------------
# Kernel
# ---------------------------------------------------------------------------
def _self_attention_kernel(x_ref, wq_ref, bq_ref, wkv_ref, bkv_ref, o_ref,
                           k_scr, v_scr, *, tq, proj_chunk):
    """One grid step == one (batch, q-tile).

    K and V for the whole sequence are projected once per batch element
    (pl.when on the first q-tile) into persistent VMEM scratch, in chunks of
    `proj_chunk` rows so the f32 projection intermediate stays small.  Q is
    projected per q-tile from the resident x block (scale already folded into
    wq/bq by the wrapper).
    """
    s, d = k_scr.shape
    qi = pl.program_id(1)
    n_chunks = s // proj_chunk  # static

    def project_kv_chunk(c):
        row = pl.multiple_of(c * proj_chunk, proj_chunk)
        xc = x_ref[pl.ds(row, proj_chunk), :]                       # (C, D)
        kv = jnp.dot(xc, wkv_ref[...],
                     preferred_element_type=jnp.float32) + bkv_ref[...]
        k_scr[pl.ds(row, proj_chunk), :] = kv[:, 0:d].astype(k_scr.dtype)
        v_scr[pl.ds(row, proj_chunk), :] = kv[:, d:2 * d].astype(v_scr.dtype)

    @pl.when(qi == 0)
    def _():
        # NOTE: this once-per-batch init is only safe while the q-tile axis is
        # never split across cores ("arbitrary" semantics below).
        if n_chunks == 1:
            project_kv_chunk(0)
        else:
            def body(c, carry):
                project_kv_chunk(c)
                return carry
            lax.fori_loop(0, n_chunks, body, 0)

    # Q projection for this tile only: (Tq, D) @ (D, D); 1/sqrt(D) is already
    # folded into wq_ref / bq_ref.
    row = pl.multiple_of(qi * tq, tq)
    x_tile = x_ref[pl.ds(row, tq), :]
    q = (jnp.dot(x_tile, wq_ref[...], preferred_element_type=jnp.float32)
         + bq_ref[...]).astype(k_scr.dtype)

    # scores = Q @ K^T without an explicit transpose of K.
    scores = lax.dot_general(
        q, k_scr[...],
        dimension_numbers=(((1,), (1,)), ((), ())),
        preferred_element_type=jnp.float32)                         # (Tq, S)

    # Numerically-stable softmax over the key axis (dim=2 of the module).
    m = jnp.max(scores, axis=-1, keepdims=True)
    e = jnp.exp(scores - m)
    denom = jnp.sum(e, axis=-1, keepdims=True)
    attn = e * pl.reciprocal(denom, approx=True)                    # EUP vrcp

    o_ref[...] = jnp.dot(attn.astype(v_scr.dtype), v_scr[...],
                         preferred_element_type=jnp.float32).astype(o_ref.dtype)


# ---------------------------------------------------------------------------
# VMEM-aware sizing helpers
# ---------------------------------------------------------------------------
def _device_vmem_bytes():
    """Per-core VMEM capacity; conservative 64 MiB (v7x) if the query fails."""
    try:
        cap = getattr(pltpu.get_tpu_info(), "vmem_capacity_bytes", None)
        if cap:
            return int(cap)
    except Exception:
        pass
    return 64 * 1024 * 1024


def _pick_divisor(n, ladder, default):
    for t in ladder:
        if n % t == 0:
            return t
    return default


def _vmem_estimate(S, D, tq, proj_chunk, itemsize, out_itemsize):
    """Honest per-core VMEM footprint estimate for the chosen tiling."""
    pipelined_in = 2 * (S * D * itemsize            # x (full sequence)
                        + D * D * itemsize          # wq (scaled)
                        + 2 * D * D * itemsize      # wkv
                        + 3 * D * 4)                # bq + bkv (f32)
    pipelined_out = 2 * tq * D * out_itemsize       # output double buffer
    scratch = 2 * S * D * itemsize                  # persistent K/V
    f32_tmp = 4 * (3 * tq * S                       # scores, e, attn
                   + tq * D                         # q before cast
                   + proj_chunk * 2 * D)            # kv projection chunk
    cast_tmp = tq * S * itemsize + tq * D * itemsize  # attn / q casts
    return pipelined_in + pipelined_out + scratch + f32_tmp + cast_tmp


def _pick_tq(S, D, itemsize, out_itemsize, proj_chunk, budget):
    """Largest q-tile from the ladder that divides S and fits the budget."""
    candidates = [t for t in (512, 256, 128, 64, 32, 16, 8) if S % t == 0]
    if not candidates:
        candidates = [S]
    for t in candidates:
        if _vmem_estimate(S, D, t, proj_chunk, itemsize, out_itemsize) <= budget:
            return t
    return candidates[-1]


# ---------------------------------------------------------------------------
# Wrapper
# ---------------------------------------------------------------------------
def self_attention(x, wq, bq, wk, bk, wv, bv, *, tq=None, compute_dtype=None):
    """x: (B, S, D); wq/wk/wv: (D, D) pre-transposed; bq/bk/bv: (1, D) or (D,)."""
    B, S, D = x.shape
    out_dtype = x.dtype
    if compute_dtype is None:
        # bf16 matmul operands (f32 accumulation) is the MXU fast path on all
        # generations and halves every VMEM buffer.
        compute_dtype = jnp.bfloat16 if x.dtype == jnp.float32 else x.dtype
    compute_dtype = jnp.dtype(compute_dtype)
    scale = 1.0 / (D ** 0.5)

    # Fold the 1/sqrt(D) scale into the Q projection (free: scales a (D, D)
    # weight once outside the kernel).  Fuse K/V weights into one (D, 2D)
    # matmul.  Biases stay f32 (added to f32 accumulators).
    wq_s = (wq * scale).astype(compute_dtype)
    bq_s = (jnp.reshape(bq, (1, D)) * scale).astype(jnp.float32)
    wkv = jnp.concatenate([wk, wv], axis=1).astype(compute_dtype)        # (D, 2D)
    bkv = jnp.concatenate([jnp.reshape(bk, (1, D)),
                           jnp.reshape(bv, (1, D))], axis=1).astype(jnp.float32)
    x_c = x.astype(compute_dtype)

    itemsize = compute_dtype.itemsize
    out_itemsize = jnp.dtype(out_dtype).itemsize
    device_vmem = _device_vmem_bytes()
    budget = int(0.8 * device_vmem)

    # Row-chunk for the K/V projection (bounds its f32 intermediate).
    proj_chunk = _pick_divisor(S, (512, 256, 128, 64, 32, 16, 8), default=S)

    if tq is None:
        tq = _pick_tq(S, D, itemsize, out_itemsize, proj_chunk, budget)
    if S % tq != 0:
        raise ValueError(f"tq={tq} must divide S={S}")

    vmem_est = _vmem_estimate(S, D, tq, proj_chunk, itemsize, out_itemsize)
    vmem_limit = int(min(max(int(vmem_est * 1.25), 16 * 1024 * 1024),
                         int(0.9 * device_vmem)))

    kernel = functools.partial(_self_attention_kernel, tq=tq,
                               proj_chunk=proj_chunk)

    # Block indices for x / weights / biases are constant within a batch
    # element, so Pallas only re-DMAs them when the batch index changes.
    in_specs = [
        pl.BlockSpec((None, S, D), lambda b, i: (b, 0, 0)),   # x (full seq)
        pl.BlockSpec((D, D), lambda b, i: (0, 0)),            # wq (scaled)
        pl.BlockSpec((1, D), lambda b, i: (0, 0)),            # bq (scaled, f32)
        pl.BlockSpec((D, 2 * D), lambda b, i: (0, 0)),        # wkv
        pl.BlockSpec((1, 2 * D), lambda b, i: (0, 0)),        # bkv (f32)
    ]
    out_spec = pl.BlockSpec((None, tq, D), lambda b, i: (b, i, 0))

    # TODO(synk): for real model sizes use D (or a head-folded output dim)
    # that is a multiple of 128 so stores are lane-dense; D=32 matches the
    # module spec here.  For S where K/V scratch no longer fits VMEM, move to
    # a flash-style online-softmax kv grid axis.
    return pl.pallas_call(
        kernel,
        out_shape=jax.ShapeDtypeStruct((B, S, D), out_dtype),
        grid_spec=pltpu.PrefetchScalarGridSpec(
            num_scalar_prefetch=0,
            grid=(B, S // tq),
            in_specs=in_specs,
            out_specs=out_spec,
            scratch_shapes=[pltpu.VMEM((S, D), compute_dtype),   # K
                            pltpu.VMEM((S, D), compute_dtype)],  # V
        ),
        compiler_params=pltpu.CompilerParams(
            # Batch axis parallel (megacore); the q-tile axis carries the
            # once-per-batch scratch init, so it must stay "arbitrary".
            dimension_semantics=("parallel", "arbitrary"),
            vmem_limit_bytes=vmem_limit),
    )(x_c, wq_s, bq_s, wkv, bkv)


# ---------------------------------------------------------------------------
# Reference & test harness
# ---------------------------------------------------------------------------
def _reference(x, wq, bq, wk, bk, wv, bv):
    q = x @ wq + bq
    k = x @ wk + bk
    v = x @ wv + bv
    d = x.shape[-1]
    scores = jnp.einsum("bqd,bkd->bqk", q, k) / (d ** 0.5)
    attn = jax.nn.softmax(scores, axis=-1)
    return jnp.einsum("bqk,bkd->bqd", attn, v)


def _make_inputs(key, B, S, D):
    kx, k1, k2, k3, k4, k5, k6 = jax.random.split(key, 7)
    x = jax.random.normal(kx, (B, S, D), dtype=jnp.float32)
    # Deterministic nn.Linear-style init: uniform(-1/sqrt(D), 1/sqrt(D)).
    bound = 1.0 / (D ** 0.5)
    wq = jax.random.uniform(k1, (D, D), jnp.float32, -bound, bound)
    wk = jax.random.uniform(k2, (D, D), jnp.float32, -bound, bound)
    wv = jax.random.uniform(k3, (D, D), jnp.float32, -bound, bound)
    bq = jax.random.uniform(k4, (1, D), jnp.float32, -bound, bound)
    bk = jax.random.uniform(k5, (1, D), jnp.float32, -bound, bound)
    bv = jax.random.uniform(k6, (1, D), jnp.float32, -bound, bound)
    return x, wq, bq, wk, bk, wv, bv


if __name__ == "__main__":
    key0, key1 = jax.random.split(jax.random.PRNGKey(0), 2)

    # (1) Shape matching the module (batch=2, seq=8, hidden=32); default
    #     bf16 matmul operands + approx reciprocal -> loose tolerance.
    args = _make_inputs(key0, B=2, S=8, D=32)
    out = jax.block_until_ready(self_attention(*args))
    ref = jax.block_until_ready(_reference(*args))
    np.testing.assert_allclose(np.asarray(out, dtype=np.float32),
                               np.asarray(ref), rtol=2e-2, atol=2e-2)

    # (2) Tiled-sequence path (grid = (2, 4)) with f32 compute -> tight
    #     tolerance (only the approx reciprocal differs from the reference).
    args2 = _make_inputs(key1, B=2, S=32, D=32)
    out2 = jax.block_until_ready(
        self_attention(*args2, tq=8, compute_dtype=jnp.float32))
    ref2 = jax.block_until_ready(_reference(*args2))
    np.testing.assert_allclose(np.asarray(out2), np.asarray(ref2),
                               rtol=2e-3, atol=2e-3)

    print("KERNEL_OK")
</pallas_src>

<mosaic_0001>
module attributes {stable_mosaic.version = 11 : i64} {
  func.func @_self_attention_kernel(%arg0: i32, %arg1: i32, %arg2: memref<1x8x32xbf16, #tpu.memory_space<vmem>>, %arg3: memref<32x32xbf16, #tpu.memory_space<vmem>>, %arg4: memref<1x32xf32, #tpu.memory_space<vmem>>, %arg5: memref<32x64xbf16, #tpu.memory_space<vmem>>, %arg6: memref<1x64xf32, #tpu.memory_space<vmem>>, %arg7: memref<1x8x32xf32, #tpu.memory_space<vmem>>, %arg8: memref<8x32xbf16, #tpu.memory_space<vmem>>, %arg9: memref<8x32xbf16, #tpu.memory_space<vmem>>) attributes {dimension_semantics = [#tpu.dimension_semantics<parallel>, #tpu.dimension_semantics<arbitrary>], iteration_bounds = array<i64: 2, 1>, scalar_prefetch = 0 : i64, scratch_operands = 2 : i64, tpu.core_type = #tpu.core_type<tc>, window_params = [{transform_indices = @transform_0, window_bounds = array<i64: 1, 8, 32>}, {pipeline_mode = #tpu.pipeline_mode<synchronous>, transform_indices = @transform_1, window_bounds = array<i64: 32, 32>}, {pipeline_mode = #tpu.pipeline_mode<synchronous>, transform_indices = @transform_2, window_bounds = array<i64: 1, 32>}, {pipeline_mode = #tpu.pipeline_mode<synchronous>, transform_indices = @transform_3, window_bounds = array<i64: 32, 64>}, {pipeline_mode = #tpu.pipeline_mode<synchronous>, transform_indices = @transform_4, window_bounds = array<i64: 1, 64>}, {transform_indices = @transform_5, window_bounds = array<i64: 1, 8, 32>}]} {
    %c0_i32 = arith.constant 0 : i32
    %0 = arith.cmpi eq, %arg1, %c0_i32 : i32
    %1 = arith.extui %0 : i1 to i32
    %c0_i32_0 = arith.constant 0 : i32
    %2 = arith.cmpi ne, %1, %c0_i32_0 : i32
    scf.if %2 {
      %c0_i32_17 = arith.constant 0 : i32
      %32 = tpu.assume_multiple %c0_i32_17, 8 : i32
      %c0_18 = arith.constant 0 : index
      %33 = arith.index_cast %32 : i32 to index
      %c0_19 = arith.constant 0 : index
      %34 = vector.load %arg2[%c0_18, %33, %c0_19] : memref<1x8x32xbf16, #tpu.memory_space<vmem>>, vector<1x8x32xbf16>
      %35 = vector.shape_cast %34 : vector<1x8x32xbf16> to vector<8x32xbf16>
      %c0_20 = arith.constant 0 : index
      %c0_21 = arith.constant 0 : index
      %36 = vector.load %arg5[%c0_20, %c0_21] : memref<32x64xbf16, #tpu.memory_space<vmem>>, vector<32x64xbf16>
      %cst_22 = arith.constant dense<0.000000e+00> : vector<8x64xf32>
      %37 = tpu.matmul %35, %36, %cst_22 {dimension_numbers = #tpu.dot_dimension_numbers<[1], [0], [0], [1], [0, 0, 1, 1], [], []>} : vector<8x32xbf16>, vector<32x64xbf16>, vector<8x64xf32> -> vector<8x64xf32>
      %c0_23 = arith.constant 0 : index
      %c0_24 = arith.constant 0 : index
      %38 = vector.load %arg6[%c0_23, %c0_24] : memref<1x64xf32, #tpu.memory_space<vmem>>, vector<1x64xf32>
      %39 = vector.broadcast %38 : vector<1x64xf32> to vector<8x64xf32>
      %40 = arith.addf %37, %39 : vector<8x64xf32>
      %41 = vector.extract_strided_slice %40 {offsets = [0, 0], sizes = [8, 32], strides = [1, 1]} : vector<8x64xf32> to vector<8x32xf32>
      %42 = arith.truncf %41 : vector<8x32xf32> to vector<8x32xbf16>
      %43 = arith.index_cast %32 : i32 to index
      %c0_25 = arith.constant 0 : index
      %44 = vector.load %arg8[%43, %c0_25] : memref<8x32xbf16, #tpu.memory_space<vmem>>, vector<8x32xbf16>
      tpu.vector_store %arg8[%43, %c0_25], %42 {strides = array<i32>} : memref<8x32xbf16, #tpu.memory_space<vmem>>, vector<8x32xbf16>,
      %45 = vector.extract_strided_slice %40 {offsets = [0, 32], sizes = [8, 32], strides = [1, 1]} : vector<8x64xf32> to vector<8x32xf32>
      %46 = arith.truncf %45 : vector<8x32xf32> to vector<8x32xbf16>
      %47 = arith.index_cast %32 : i32 to index
      %c0_26 = arith.constant 0 : index
      %48 = vector.load %arg9[%47, %c0_26] : memref<8x32xbf16, #tpu.memory_space<vmem>>, vector<8x32xbf16>
      tpu.vector_store %arg9[%47, %c0_26], %46 {strides = array<i32>} : memref<8x32xbf16, #tpu.memory_space<vmem>>, vector<8x32xbf16>,
    } else {
    }
    %c8_i32 = arith.constant 8 : i32
    %3 = arith.muli %arg1, %c8_i32 : i32
    %4 = tpu.assume_multiple %3, 8 : i32
    %c0 = arith.constant 0 : index
    %5 = arith.index_cast %4 : i32 to index
    %c0_1 = arith.constant 0 : index
    %6 = vector.load %arg2[%c0, %5, %c0_1] : memref<1x8x32xbf16, #tpu.memory_space<vmem>>, vector<1x8x32xbf16>
    %7 = vector.shape_cast %6 : vector<1x8x32xbf16> to vector<8x32xbf16>
    %c0_2 = arith.constant 0 : index
    %c0_3 = arith.constant 0 : index
    %8 = vector.load %arg3[%c0_2, %c0_3] : memref<32x32xbf16, #tpu.memory_space<vmem>>, vector<32x32xbf16>
    %cst = arith.constant dense<0.000000e+00> : vector<8x32xf32>
    %9 = tpu.matmul %7, %8, %cst {dimension_numbers = #tpu.dot_dimension_numbers<[1], [0], [0], [1], [0, 0, 1, 1], [], []>} : vector<8x32xbf16>, vector<32x32xbf16>, vector<8x32xf32> -> vector<8x32xf32>
    %c0_4 = arith.constant 0 : index
    %c0_5 = arith.constant 0 : index
    %10 = vector.load %arg4[%c0_4, %c0_5] : memref<1x32xf32, #tpu.memory_space<vmem>>, vector<1x32xf32>
    %11 = vector.broadcast %10 : vector<1x32xf32> to vector<8x32xf32>
    %12 = arith.addf %9, %11 : vector<8x32xf32>
    %13 = arith.truncf %12 : vector<8x32xf32> to vector<8x32xbf16>
    %c0_6 = arith.constant 0 : index
    %c0_7 = arith.constant 0 : index
    %14 = vector.load %arg8[%c0_6, %c0_7] : memref<8x32xbf16, #tpu.memory_space<vmem>>, vector<8x32xbf16>
    %cst_8 = arith.constant dense<0.000000e+00> : vector<8x8xf32>
    %15 = tpu.matmul %13, %14, %cst_8 {dimension_numbers = #tpu.dot_dimension_numbers<[1], [1], [0], [0], [0, 0, 1, 0], [], []>} : vector<8x32xbf16>, vector<8x32xbf16>, vector<8x8xf32> -> vector<8x8xf32>
    %cst_9 = arith.constant dense<0xFF800000> : vector<8xf32>
    %16 = vector.multi_reduction <maximumf>, %15, %cst_9 [1] : vector<8x8xf32> to vector<8xf32>
    %17 = vector.shape_cast %16 : vector<8xf32> to vector<8x1xf32>
    %18 = vector.broadcast %17 : vector<8x1xf32> to vector<8x8xf32>
    %19 = arith.subf %15, %18 : vector<8x8xf32>
    %20 = math.exp %19 : vector<8x8xf32>
    %cst_10 = arith.constant dense<0.000000e+00> : vector<8xf32>
    %21 = vector.multi_reduction <add>, %20, %cst_10 [1] : vector<8x8xf32> to vector<8xf32>
    %22 = vector.shape_cast %21 : vector<8xf32> to vector<8x1xf32>
    %23 = tpu.reciprocal %22 {approx = true} : vector<8x1xf32> -> vector<8x1xf32>
    %24 = vector.broadcast %23 : vector<8x1xf32> to vector<8x8xf32>
    %25 = arith.mulf %20, %24 : vector<8x8xf32>
    %26 = arith.truncf %25 : vector<8x8xf32> to vector<8x8xbf16>
    %c0_11 = arith.constant 0 : index
    %c0_12 = arith.constant 0 : index
    %27 = vector.load %arg9[%c0_11, %c0_12] : memref<8x32xbf16, #tpu.memory_space<vmem>>, vector<8x32xbf16>
    %cst_13 = arith.constant dense<0.000000e+00> : vector<8x32xf32>
    %28 = tpu.matmul %26, %27, %cst_13 {dimension_numbers = #tpu.dot_dimension_numbers<[1], [0], [0], [1], [0, 0, 1, 1], [], []>} : vector<8x8xbf16>, vector<8x32xbf16>, vector<8x32xf32> -> vector<8x32xf32>
    %c0_14 = arith.constant 0 : index
    %c0_15 = arith.constant 0 : index
    %c0_16 = arith.constant 0 : index
    %29 = vector.load %arg7[%c0_14, %c0_15, %c0_16] : memref<1x8x32xf32, #tpu.memory_space<vmem>>, vector<1x8x32xf32>
    %30 = vector.shape_cast %29 : vector<1x8x32xf32> to vector<8x32xf32>
    %31 = vector.shape_cast %28 : vector<8x32xf32> to vector<1x8x32xf32>
    tpu.vector_store %arg7[%c0_14, %c0_15, %c0_16], %31 {strides = array<i32>} : memref<1x8x32xf32, #tpu.memory_space<vmem>>, vector<1x8x32xf32>,
    return
  }
  func.func @transform_0(%arg0: i32, %arg1: i32) -> (i32, i32, i32) {
    %c0_i32 = arith.constant 0 : i32
    %c0_i32_0 = arith.constant 0 : i32
    %c0_i32_1 = arith.constant 0 : i32
    return %arg0, %c0_i32, %c0_i32_0 : i32, i32, i32
  }
  func.func @transform_1(%arg0: i32, %arg1: i32) -> (i32, i32) {
    %c0_i32 = arith.constant 0 : i32
    %c0_i32_0 = arith.constant 0 : i32
    %c0_i32_1 = arith.constant 0 : i32
    return %c0_i32, %c0_i32_0 : i32, i32
  }
  func.func @transform_2(%arg0: i32, %arg1: i32) -> (i32, i32) {
    %c0_i32 = arith.constant 0 : i32
    %c0_i32_0 = arith.constant 0 : i32
    %c0_i32_1 = arith.constant 0 : i32
    return %c0_i32, %c0_i32_0 : i32, i32
  }
  func.func @transform_3(%arg0: i32, %arg1: i32) -> (i32, i32) {
    %c0_i32 = arith.constant 0 : i32
    %c0_i32_0 = arith.constant 0 : i32
    %c0_i32_1 = arith.constant 0 : i32
    return %c0_i32, %c0_i32_0 : i32, i32
  }
  func.func @transform_4(%arg0: i32, %arg1: i32) -> (i32, i32) {
    %c0_i32 = arith.constant 0 : i32
    %c0_i32_0 = arith.constant 0 : i32
    %c0_i32_1 = arith.constant 0 : i32
    return %c0_i32, %c0_i32_0 : i32, i32
  }
  func.func @transform_5(%arg0: i32, %arg1: i32) -> (i32, i32, i32) {
    %c0_i32 = arith.constant 0 : i32
    %c0_i32_0 = arith.constant 0 : i32
    return %arg0, %arg1, %c0_i32 : i32, i32, i32
  }
}

</mosaic_0001>

<llo_original>
// kernel: tpu_custom_call.1
$region0: #{tpu_custom_call.1}
  #allocation0 [shape = 'u32[]', space=smem, size = 0x4, offset = 0x4, fixed_abs, tag = 'smem constant byte address 0x4 - core index']
  #allocation1 [shape = 'u32[144,128]{1,0:T(1,128)}', space=vmem, size = 0x12000, scoped, tag = 'internal scratch']
  #allocation2 [shape = 'bf16[8,32]{1,0:T(8,128)(2,1)}', space=vmem, size = 0x800, scoped, tag = 'scratch operand']
  #allocation3 [shape = 'bf16[8,32]{1,0:T(8,128)(2,1)}', space=vmem, size = 0x800, scoped, tag = 'scratch operand']
  %s0 = inlined_call_operand.hbm [shape: bf16[2,8,32], index: 0, kind: input, shape index: {}]
  %s1 = inlined_call_operand.hbm [shape: bf16[32,32], index: 1, kind: input, shape index: {}]
  %s2 = inlined_call_operand.vmem [shape: f32[1,32], index: 2, kind: input, shape index: {}]
  %s3 = inlined_call_operand.hbm [shape: bf16[32,64], index: 3, kind: input, shape index: {}]
  %s4 = inlined_call_operand.vmem [shape: f32[1,64], index: 4, kind: input, shape index: {}]
  %s5 = inlined_call_operand.hbm [shape: f32[2,8,32], index: 5, kind: output, shape index: {}]
  %s6 = sld [smem:[#allocation0]]
  $region69: #{tpu_custom_call.1} parent=0
    _
  %s8 = ssub.s32 1, %s6
  %s9 = scalar_select 0, %s8, %s6
  $region1: #{tpu_custom_call.1} parent=0
    #allocation4 [shape = 'u8[4096]{0}', space=vmem, size = 0x1000, scoped, tag = 'input window, operand 0']
    #allocation5 [shape = 's32[2]{0}', space=sflag, size = 0x8, scoped, tag = 'scoped memory for tpu_custom_call.1']
    #allocation6 [shape = 's32[2]{0}', space=sflag, size = 0x8, scoped, tag = 'scoped memory for tpu_custom_call.1']
    #allocation7 [shape = 'u8[8192]{0}', space=vmem, size = 0x2000, scoped, tag = 'input window, operand 1, single buffered']
    #allocation8 [shape = 's32[1]{0}', space=sflag, size = 0x4, scoped, tag = 'scoped memory for tpu_custom_call.1']
    #allocation9 [shape = 'u8[8192]{0}', space=vmem, size = 0x2000, scoped, tag = 'input window, operand 3, single buffered']
    #allocation10 [shape = 'u8[8192]{0}', space=vmem, size = 0x2000, scoped, tag = 'output window, operand 0']
    %10 = vsyncpa [#allocation5], 0
    %s11 = scalar_lea.sflag [#allocation5], 1
    %12 = vsyncpa %s11, 0
    %13 = vsyncpa [#allocation8], 0
    %14 = vsyncpa [#allocation6], 0
    %s15 = scalar_lea.sflag [#allocation6], 1
    %16 = vsyncpa %s15, 0
    loop: start=0, step=1, limit=4
    $region2: #{tpu_custom_call.1} parent=1 // loop_pre_header
      _
    $region3: #{tpu_custom_call.1} parent=1 // loop_header
      %s18 = sphi 0, %s22
      %p19 = scmp.ge.s32.totalorder %s18, 4
      %s25 = sphi 0, %s37
      %s26 = sphi 0, %s33
      %s27 = sphi 0, %s25
      %s28 = sphi 0, %s26
      %s29 = sphi 0, %s27
      %s30 = sphi 0, %s28
      %s40 = sphi 0, %s42
      %s43 = sphi 0, %s40
      %s44 = sphi 0, %s43
      %s60 = sphi 0, %s44
      %s64 = sphi 0, %s64
      %s66 = sphi 0, %s64
      %s67 = sphi 0, %s66
      %s81 = sphi 0, %s67
      %s85 = sphi 0, %s85
      %s87 = sphi 0, %s85
      %s88 = sphi 0, %s87
      %s102 = sphi 0, %s88
      %s106 = sphi 0, %s106
      %s108 = sphi 0, %s106
      %s109 = sphi 0, %s108
      %s123 = sphi 0, %s109
      %s127 = sphi 0, %s127
      %s129 = sphi 0, %s127
      %s130 = sphi 0, %s129
      %s144 = sphi 0, %s130
      %s152 = sphi 0, %s154
      %s155 = sphi 0, %s152
      %s156 = sphi 0, %s155
      %s172 = sphi 0, %s156
    $region4: #{tpu_custom_call.1} parent=1 // loop_header_branch
      %21 = sbr.rel (%p19) target = $region8
    $region5: #{tpu_custom_call.1} parent=1 // loop_body
      %s23 = ssub.s32 %s18, 1
      %s24 = ssub.s32 %s18, 2
      %s31 = sadd.s32 1, %s26
      %p32 = scmp.ge.s32.totalorder %s31, 1
      %s33 = scalar_select %p32, 0, %s31
      %s34 = sadd.s32 1, %s25
      %s35 = scalar_select %p32, %s34, %s25
      %p36 = scmp.ge.s32.totalorder %s35, 2
      %s37 = scalar_select %p36, 0, %s35
      %s38 = ssub.s32 %s25, %s37
      %p39 = scmp.eq.s32.totalorder %s38, 0
      %s41 = sadd.s32 %s40, 1
      %s42 = scalar_select %p39, %s40, %s41
      %p45 = pneg %p39
      %p46 = scmp.eq.s32.totalorder %s18, 1
      %p47 = por %p45, %p46
      %p48 = scmp.ne.s32.totalorder %s40, %s43
      %p49 = scmp.eq.s32.totalorder %s18, 0
      %p50 = por %p48, %p49
      %p51 = scmp.ne.s32.totalorder %s40, %s43
      %p52 = scmp.eq.s32.totalorder %s23, 1
      %p53 = por %p51, %p52
      %p54 = scmp.ne.s32.totalorder %s43, %s44
      %p55 = scmp.eq.s32.totalorder %s23, 0
      %p56 = por %p54, %p55
      %p57 = scmp.ne.s32.totalorder %s43, %s44
      %p58 = scmp.eq.s32.totalorder %s24, 1
      %p59 = por %p57, %p58
      %p61 = scmp.ne.s32.totalorder %s44, %s60
      %p62 = scmp.eq.s32.totalorder %s24, 0
      %p63 = por %p61, %p62
      %s65 = sadd.s32 %s64, 1
      %p68 = scmp.eq.s32.totalorder %s18, 1
      %p69 = scmp.ne.s32.totalorder %s64, %s66
      %p70 = scmp.eq.s32.totalorder %s18, 0
      %p71 = por %p69, %p70
      %p72 = scmp.ne.s32.totalorder %s64, %s66
      %p73 = scmp.eq.s32.totalorder %s23, 1
      %p74 = por %p72, %p73
      %p75 = scmp.ne.s32.totalorder %s66, %s67
      %p76 = scmp.eq.s32.totalorder %s23, 0
      %p77 = por %p75, %p76
      %p78 = scmp.ne.s32.totalorder %s66, %s67
      %p79 = scmp.eq.s32.totalorder %s24, 1
      %p80 = por %p78, %p79
      %p82 = scmp.ne.s32.totalorder %s67, %s81
      %p83 = scmp.eq.s32.totalorder %s24, 0
      %p84 = por %p82, %p83
      %s86 = sadd.s32 %s85, 1
      %p89 = scmp.eq.s32.totalorder %s18, 1
      %p90 = scmp.ne.s32.totalorder %s85, %s87
      %p91 = scmp.eq.s32.totalorder %s18, 0
      %p92 = por %p90, %p91
      %p93 = scmp.ne.s32.totalorder %s85, %s87
      %p94 = scmp.eq.s32.totalorder %s23, 1
      %p95 = por %p93, %p94
      %p96 = scmp.ne.s32.totalorder %s87, %s88
      %p97 = scmp.eq.s32.totalorder %s23, 0
      %p98 = por %p96, %p97
      %p99 = scmp.ne.s32.totalorder %s87, %s88
      %p100 = scmp.eq.s32.totalorder %s24, 1
      %p101 = por %p99, %p100
      %p103 = scmp.ne.s32.totalorder %s88, %s102
      %p104 = scmp.eq.s32.totalorder %s24, 0
      %p105 = por %p103, %p104
      %s107 = sadd.s32 %s106, 1
      %p110 = scmp.eq.s32.totalorder %s18, 1
      %p111 = scmp.ne.s32.totalorder %s106, %s108
      %p112 = scmp.eq.s32.totalorder %s18, 0
      %p113 = por %p111, %p112
      %p114 = scmp.ne.s32.totalorder %s106, %s108
      %p115 = scmp.eq.s32.totalorder %s23, 1
      %p116 = por %p114, %p115
      %p117 = scmp.ne.s32.totalorder %s108, %s109
      %p118 = scmp.eq.s32.totalorder %s23, 0
      %p119 = por %p117, %p118
      %p120 = scmp.ne.s32.totalorder %s108, %s109
      %p121 = scmp.eq.s32.totalorder %s24, 1
      %p122 = por %p120, %p121
      %p124 = scmp.ne.s32.totalorder %s109, %s123
      %p125 = scmp.eq.s32.totalorder %s24, 0
      %p126 = por %p124, %p125
      %s128 = sadd.s32 %s127, 1
      %p131 = scmp.eq.s32.totalorder %s18, 1
      %p132 = scmp.ne.s32.totalorder %s127, %s129
      %p133 = scmp.eq.s32.totalorder %s18, 0
      %p134 = por %p132, %p133
      %p135 = scmp.ne.s32.totalorder %s127, %s129
      %p136 = scmp.eq.s32.totalorder %s23, 1
      %p137 = por %p135, %p136
      %p138 = scmp.ne.s32.totalorder %s129, %s130
      %p139 = scmp.eq.s32.totalorder %s23, 0
      %p140 = por %p138, %p139
      %p141 = scmp.ne.s32.totalorder %s129, %s130
      %p142 = scmp.eq.s32.totalorder %s24, 1
      %p143 = por %p141, %p142
      %p145 = scmp.ne.s32.totalorder %s130, %s144
      %p146 = scmp.eq.s32.totalorder %s24, 0
      %p147 = por %p145, %p146
      %s148 = ssub.s32 %s25, %s37
      %s149 = ssub.s32 %s26, %s33
      %s150 = sor.u32 %s148, %s149
      %p151 = scmp.eq.s32.totalorder %s150, 0
      %s153 = sadd.s32 %s152, 1
      %s154 = scalar_select %p151, %s152, %s153
      %p157 = pneg %p151
      %p158 = scmp.eq.s32.totalorder %s18, 1
      %p159 = por %p157, %p158
      %p160 = scmp.ne.s32.totalorder %s152, %s155
      %p161 = scmp.eq.s32.totalorder %s18, 0
      %p162 = por %p160, %p161
      %p163 = scmp.ne.s32.totalorder %s152, %s155
      %p164 = scmp.eq.s32.totalorder %s23, 1
      %p165 = por %p163, %p164
      %p166 = scmp.ne.s32.totalorder %s155, %s156
      %p167 = scmp.eq.s32.totalorder %s23, 0
      %p168 = por %p166, %p167
      %p169 = scmp.ne.s32.totalorder %s155, %s156
      %p170 = scmp.eq.s32.totalorder %s24, 1
      %p171 = por %p169, %p170
      %p173 = scmp.ne.s32.totalorder %s156, %s172
      %p174 = scmp.eq.s32.totalorder %s24, 0
      %p175 = por %p173, %p174
      %p176 = scmp.le.s32.totalorder 1, %s18
      %p177 = scmp.lt.s32.totalorder %s18, 3
      %p178 = pnand %p176, %p177
      %p179 = pneg %p178
      // Predicated region
      $region9: #{tpu_custom_call.1} parent=5 // pred_check
        _
      $region10: #{tpu_custom_call.1} parent=5 // pred_check_branch
        %181 = sbr.rel (%p178) target = $region12
      $region11: #{tpu_custom_call.1} parent=5 // pred_region
        %s182 = ssub.s32 %s18, 1
        // Predicated region
        $region13: #{tpu_custom_call.1} parent=11 // pred_check
          %p183 = pneg %p77
        $region14: #{tpu_custom_call.1} parent=11 // pred_check_branch
          %185 = sbr.rel (%p183) target = $region16
        $region15: #{tpu_custom_call.1} parent=11 // pred_region
          %s187 = ssub.s32 256, 256
          %188 = vsyncadd [#allocation8], %s187
          %s189 = sshll.u32 [#allocation7], 4
          %s190 = int_to_ptr.vmem [resolvable:$true] %s189
          %195 = dma.hbm_to_vmem [thread:$0]  %s1, 256, %s190, [#allocation8], 64, 64, 4
        $region16: #{tpu_custom_call.1} parent=11 // pred_fallthru
          _
        // Predicated region
        $region17: #{tpu_custom_call.1} parent=11 // pred_check
          %p196 = pneg %p98
        $region18: #{tpu_custom_call.1} parent=11 // pred_check_branch
          %198 = sbr.rel (%p196) target = $region20
        $region19: #{tpu_custom_call.1} parent=11 // pred_region
          _
        $region20: #{tpu_custom_call.1} parent=11 // pred_fallthru
          _
        // Predicated region
        $region21: #{tpu_custom_call.1} parent=11 // pred_check
          %p199 = pneg %p119
        $region22: #{tpu_custom_call.1} parent=11 // pred_check_branch
          %201 = sbr.rel (%p199) target = $region24
        $region23: #{tpu_custom_call.1} parent=11 // pred_region
          %s203 = ssub.s32 256, 256
          %204 = vsyncadd [#allocation8], %s203
          %s205 = sshll.u32 [#allocation9], 4
          %s206 = int_to_ptr.vmem [resolvable:$true] %s205
          %211 = dma.hbm_to_vmem [thread:$0]  %s3, 256, %s206, [#allocation8], 64, 64, 4
        $region24: #{tpu_custom_call.1} parent=11 // pred_fallthru
          _
        // Predicated region
        $region25: #{tpu_custom_call.1} parent=11 // pred_check
          %p212 = pneg %p140
        $region26: #{tpu_custom_call.1} parent=11 // pred_check_branch
          %214 = sbr.rel (%p212) target = $region28
        $region27: #{tpu_custom_call.1} parent=11 // pred_region
          _
        $region28: #{tpu_custom_call.1} parent=11 // pred_fallthru
          _
      $region12: #{tpu_custom_call.1} parent=5 // pred_fallthru
        _
      %p215 = scmp.lt.s32.totalorder %s18, 2
      // Predicated region
      $region29: #{tpu_custom_call.1} parent=5 // pred_check
        %p216 = pneg %p215
      $region30: #{tpu_custom_call.1} parent=5 // pred_check_branch
        %218 = sbr.rel (%p216) target = $region32
      $region31: #{tpu_custom_call.1} parent=5 // pred_region
        // Predicated region
        $region33: #{tpu_custom_call.1} parent=31 // pred_check
          %p219 = pneg %p50
        $region34: #{tpu_custom_call.1} parent=31 // pred_check_branch
          %221 = sbr.rel (%p219) target = $region36
        $region35: #{tpu_custom_call.1} parent=31 // pred_region
          %s222 = sand.u32 %s40, 1
          %s223 = scalar_lea.sflag [#allocation5], %s222
          %s224 = sand.u32 %s40, 1
          %s225 = smul.addr %s224, 4
          %s226 = scalar_lea.vmem [#allocation4], %s225
          %s228 = ssub.s32 64, 64
          %229 = vsyncadd %s223, %s228
          %s230 = smul.addr %s25, 64
          %s231 = scalar_lea.hbm %s0, %s230
          %s233 = sshll.u32 %s226, 4
          %s234 = int_to_ptr.vmem [resolvable:$true] %s233
          %236 = dma.hbm_to_vmem [thread:$0]  %s231, 64, %s234, %s223
        $region36: #{tpu_custom_call.1} parent=31 // pred_fallthru
          _
      $region32: #{tpu_custom_call.1} parent=5 // pred_fallthru
        _
      %p237 = scmp.le.s32.totalorder 1, %s18
      %p238 = scmp.lt.s32.totalorder %s18, 3
      %p239 = pnand %p237, %p238
      %p240 = pneg %p239
      // Predicated region
      $region37: #{tpu_custom_call.1} parent=5 // pred_check
        _
      $region38: #{tpu_custom_call.1} parent=5 // pred_check_branch
        %242 = sbr.rel (%p239) target = $region40
      $region39: #{tpu_custom_call.1} parent=5 // pred_region
        %s243 = ssub.s32 %s18, 1
        %s244 = sand.u32 %s43, 1
        %s245 = scalar_lea.sflag [#allocation5], %s244
        %s246 = sand.u32 %s43, 1
        %s247 = smul.addr %s246, 4
        %s248 = scalar_lea.vmem [#allocation4], %s247
        // Predicated region
        $region41: #{tpu_custom_call.1} parent=39 // pred_check
          %p249 = pneg %p56
        $region42: #{tpu_custom_call.1} parent=39 // pred_check_branch
          %251 = sbr.rel (%p249) target = $region44
        $region43: #{tpu_custom_call.1} parent=39 // pred_region
          %252 = dma.done %s245, 64
        $region44: #{tpu_custom_call.1} parent=39 // pred_fallthru
          _
        // Predicated region
        $region45: #{tpu_custom_call.1} parent=39 // pred_check
          %p253 = pneg %p77
        $region46: #{tpu_custom_call.1} parent=39 // pred_check_branch
          %255 = sbr.rel (%p253) target = $region48
        $region47: #{tpu_custom_call.1} parent=39 // pred_region
          %256 = dma.done [#allocation8], 256
        $region48: #{tpu_custom_call.1} parent=39 // pred_fallthru
          _
        // Predicated region
        $region49: #{tpu_custom_call.1} parent=39 // pred_check
          %p257 = pneg %p119
        $region50: #{tpu_custom_call.1} parent=39 // pred_check_branch
          %259 = sbr.rel (%p257) target = $region52
        $region51: #{tpu_custom_call.1} parent=39 // pred_region
          %260 = dma.done [#allocation8], 256
        $region52: #{tpu_custom_call.1} parent=39 // pred_fallthru
          _
        %s261 = sand.u32 %s43, 1
        %s262 = scalar_lea.sflag [#allocation5], %s261
        %s263 = sand.u32 %s43, 1
        %s264 = smul.addr %s263, 4
        %s265 = scalar_lea.vmem [#allocation4], %s264
        %p266 = pneg %p56
        %p267 = pneg %p53
        %p268 = pneg %p77
        %p269 = pneg %p74
        %p270 = pneg %p98
        %p271 = pneg %p95
        %p272 = pneg %p119
        %p273 = pneg %p116
        %p274 = pneg %p140
        %p275 = pneg %p137
        %p276 = pneg %p168
        %p277 = pneg %p165
        %s278 = sand.u32 %s155, 1
        %s279 = scalar_lea.sflag [#allocation6], %s278
        %s280 = sand.u32 %s155, 1
        %s281 = smul.addr %s280, 8
        %s282 = scalar_lea.vmem [#allocation10], %s281
        %p284 = scmp.eq.s32.totalorder %s28, 0
        // Predicated region
        $region53: #{tpu_custom_call.1} parent=39 // pred_check
          %p285 = pneg %p284
        $region54: #{tpu_custom_call.1} parent=39 // pred_check_branch
          %287 = sbr.rel (%p285) target = $region56
        $region55: #{tpu_custom_call.1} parent=39 // pred_region
          %v288 = vld [vmem:[%s248] sm:$0xf]
          %v289 = vld [vmem:[#allocation9] sm:$0xf]
          %v290 = vld [vmem:[#allocation9 + $0x4] sm:$0xf]
          %v291 = vld [vmem:[#allocation9 + $0x8] sm:$0xf]
          %v292 = vld [vmem:[#allocation9 + $0xc] sm:$0xf]
          %v293 = vld [vmem:[%s4] sm:$0x1]
          %v295 = vlaneseq
          %v296 = vshrl.u32 %v295, 7
          %v297 = vsub.s32 0, %v296
          %v298 = vrot.slane %v293, %v297
          %v304 = vunpack.c.l.b16 %v289
          %v305 = vunpack.c.l.b16 %v290
          %v306 = vunpack.c.l.b16 %v291
          %v307 = vunpack.c.l.b16 %v292
          %v308 = vpack.c.b16 %v305, %v304
          %v309 = vpack.c.b16 %v307, %v306
          %vm312 = vcmask 261120
          %v314 = vsel %vm312, %v288, 0
          %316 = vmatprep.subr.bf16.mxu0 0
          %317 = vmatpush1.bf16.msra.mxu0 %v308
          %318 = vmatprep.subr.bf16.mxu0 0
          %319 = vmatpush1.bf16.msra.mxu0 %v309
          %320 = vmatprep.subr.bf16.mxu0 0
          %321 = vmatpush1.bf16.msra.mxu0 0
          %322 = vmatprep.subr.bf16.mxu0 0
          %323 = vmatpush1.bf16.msra.mxu0 0
          %324 = vmatprep.subr.bf16.mxu0 0
          %325 = vmatpush1.bf16.msra.mxu0 0
          %326 = vmatprep.subr.bf16.mxu0 0
          %327 = vmatpush1.bf16.msra.mxu0 0
          %328 = vmatprep.subr.bf16.mxu0 0
          %329 = vmatpush1.bf16.msra.mxu0 0
          %330 = vmatprep.subr.bf16.mxu0 0
          %331 = vmatpush1.bf16.msra.mxu0 0
          %332 = vmatprep.subr.bf16.mxu0 0
          %333 = vmatpush1.bf16.msra.mxu0 0
          %334 = vmatprep.subr.bf16.mxu0 0
          %335 = vmatpush1.bf16.msra.mxu0 0
          %336 = vmatprep.subr.bf16.mxu0 0
          %337 = vmatpush1.bf16.msra.mxu0 0
          %338 = vmatprep.subr.bf16.mxu0 0
          %339 = vmatpush1.bf16.msra.mxu0 0
          %340 = vmatprep.subr.bf16.mxu0 0
          %341 = vmatpush1.bf16.msra.mxu0 0
          %342 = vmatprep.subr.bf16.mxu0 0
          %343 = vmatpush1.bf16.msra.mxu0 0
          %344 = vmatprep.subr.bf16.mxu0 0
          %345 = vmatpush1.bf16.msra.mxu0 0
          %346 = vmatprep.subr.bf16.mxu0 0
          %347 = vmatpush1.bf16.msra.mxu0 0
          %348 = vmatprep.mubr.bf16.mxu0 0
          %349 = vmatmul.mubr.bf16.gmra.mrb[0].mxu0 %v314
          %v350 = vpop.f32.mrb[0].mxu0
          %v351 = vadd.f32 %v298, %v350
          %v352 = vpop.f32.mrb[0].mxu0
          %v353 = vpop.f32.mrb[0].mxu0
          %v354 = vpop.f32.mrb[0].mxu0
          %355 = vdwg.mxu0
          %v356 = vpack.c.bf16 %v351, %v351
          %vm357 = vcmask 257024
          %358 = vst.msk [vmem:[#allocation2] sm:$0xf] %vm357, %v356
          %v360 = vunpack.c.l.b16 %v356
          %v361 = vpack.c.b16 %v360, %v360
          %362 = vrot.lane.b32.xlu0 %v361, 96
          %v363 = vpop.permute.xlu0 %362
          %365 = vst.msk [vmem:[#allocation3] sm:$0xf] %vm357, %v363
        $region56: #{tpu_custom_call.1} parent=39 // pred_fallthru
          _
        %s366 = smul.u32 %s28, 8
        %s367 = sshra.s32 %s366, 3
        %s368 = sand.u32 %s366, 7
        %s369 = smul.addr %s367, 4
        %s370 = scalar_lea.vmem %s248, %s369 [#allocation4]
        %v371 = vld [vmem:[%s370] sm:$0xf]
        %v372 = vld [vmem:[#allocation7] sm:$0xf]
        %v373 = vld [vmem:[#allocation7 + $0x4] sm:$0xf]
        %v374 = vld [vmem:[#allocation7 + $0x8] sm:$0xf]
        %v375 = vld [vmem:[#allocation7 + $0xc] sm:$0xf]
        %v376 = vld [vmem:[%s2] sm:$0x1]
        %v378 = vlaneseq
        %v379 = vshrl.u32 %v378, 7
        %v380 = vsub.s32 0, %v379
        %v381 = vrot.slane %v376, %v380
        %v387 = vunpack.c.l.b16 %v372
        %v388 = vunpack.c.l.b16 %v373
        %v389 = vunpack.c.l.b16 %v374
        %v390 = vunpack.c.l.b16 %v375
        %v391 = vpack.c.b16 %v388, %v387
        %v392 = vpack.c.b16 %v390, %v389
        %vm395 = vcmask 261120
        %v397 = vsel %vm395, %v371, 0
        %399 = vmatprep.subr.bf16.mxu0 0
        %400 = vmatpush1.bf16.msra.mxu0 %v391
        %401 = vmatprep.subr.bf16.mxu0 0
        %402 = vmatpush1.bf16.msra.mxu0 %v392
        %403 = vmatprep.subr.bf16.mxu0 0
        %404 = vmatpush1.bf16.msra.mxu0 0
        %405 = vmatprep.subr.bf16.mxu0 0
        %406 = vmatpush1.bf16.msra.mxu0 0
        %407 = vmatprep.subr.bf16.mxu0 0
        %408 = vmatpush1.bf16.msra.mxu0 0
        %409 = vmatprep.subr.bf16.mxu0 0
        %410 = vmatpush1.bf16.msra.mxu0 0
        %411 = vmatprep.subr.bf16.mxu0 0
        %412 = vmatpush1.bf16.msra.mxu0 0
        %413 = vmatprep.subr.bf16.mxu0 0
        %414 = vmatpush1.bf16.msra.mxu0 0
        %415 = vmatprep.subr.bf16.mxu0 0
        %416 = vmatpush1.bf16.msra.mxu0 0
        %417 = vmatprep.subr.bf16.mxu0 0
        %418 = vmatpush1.bf16.msra.mxu0 0
        %419 = vmatprep.subr.bf16.mxu0 0
        %420 = vmatpush1.bf16.msra.mxu0 0
        %421 = vmatprep.subr.bf16.mxu0 0
        %422 = vmatpush1.bf16.msra.mxu0 0
        %423 = vmatprep.subr.bf16.mxu0 0
        %424 = vmatpush1.bf16.msra.mxu0 0
        %425 = vmatprep.subr.bf16.mxu0 0
        %426 = vmatpush1.bf16.msra.mxu0 0
        %427 = vmatprep.subr.bf16.mxu0 0
        %428 = vmatpush1.bf16.msra.mxu0 0
        %429 = vmatprep.subr.bf16.mxu0 0
        %430 = vmatpush1.bf16.msra.mxu0 0
        %431 = vmatprep.mubr.bf16.mxu0 0
        %432 = vmatmul.mubr.bf16.gmra.mrb[0].mxu0 %v397
        %v433 = vpop.f32.mrb[0].mxu0
        %v434 = vadd.f32 %v381, %v433
        %v435 = vpop.f32.mrb[0].mxu0
        %v436 = vpop.f32.mrb[0].mxu0
        %v437 = vpop.f32.mrb[0].mxu0
        %438 = vdwg.mxu0
        %v439 = vpack.c.bf16 %v434, %v434
        %v440 = vld [vmem:[#allocation2] sm:$0xf]
        %v442 = vsel %vm395, %v439, 0
        %v445 = vsel %vm395, %v440, 0
        %447 = vmatprep.subr.bf16.mxu0 0
        %448 = vmatpush1.bf16.xpose.msra.mxu0 %v445
        %449 = vmatprep.subr.bf16.mxu0 0
        %450 = vmatpush1.bf16.xpose.msra.mxu0 0
        %451 = vmatprep.subr.bf16.mxu0 0
        %452 = vmatpush1.bf16.xpose.msra.mxu0 0
        %453 = vmatprep.subr.bf16.mxu0 0
        %454 = vmatpush1.bf16.xpose.msra.mxu0 0
        %455 = vmatprep.subr.bf16.mxu0 0
        %456 = vmatpush1.bf16.xpose.msra.mxu0 0
        %457 = vmatprep.subr.bf16.mxu0 0
        %458 = vmatpush1.bf16.xpose.msra.mxu0 0
        %459 = vmatprep.subr.bf16.mxu0 0
        %460 = vmatpush1.bf16.xpose.msra.mxu0 0
        %461 = vmatprep.subr.bf16.mxu0 0
        %462 = vmatpush1.bf16.xpose.msra.mxu0 0
        %463 = vmatprep.subr.bf16.mxu0 0
        %464 = vmatpush1.bf16.xpose.msra.mxu0 0
        %465 = vmatprep.subr.bf16.mxu0 0
        %466 = vmatpush1.bf16.xpose.msra.mxu0 0
        %467 = vmatprep.subr.bf16.mxu0 0
        %468 = vmatpush1.bf16.xpose.msra.mxu0 0
        %469 = vmatprep.subr.bf16.mxu0 0
        %470 = vmatpush1.bf16.xpose.msra.mxu0 0
        %471 = vmatprep.subr.bf16.mxu0 0
        %472 = vmatpush1.bf16.xpose.msra.mxu0 0
        %473 = vmatprep.subr.bf16.mxu0 0
        %474 = vmatpush1.bf16.xpose.msra.mxu0 0
        %475 = vmatprep.subr.bf16.mxu0 0
        %476 = vmatpush1.bf16.xpose.msra.mxu0 0
        %477 = vmatprep.subr.bf16.mxu0 0
        %478 = vmatpush1.bf16.xpose.msra.mxu0 0
        %479 = vmatprep.mubr.bf16.mxu0 0
        %480 = vmatmul.mubr.bf16.gmra.mrb[0].mxu0 %v442
        %v481 = vpop.f32.mrb[0].mxu0
        %v482 = vadd.f32 0.0, %v481
        %v483 = vpop.f32.mrb[0].mxu0
        %v484 = vpop.f32.mrb[0].mxu0
        %v485 = vpop.f32.mrb[0].mxu0
        %486 = vdwg.mxu0
        %vm487 = vcmask 64512
        %v488 = vsel %vm487, %v482, -inf
        %489 = vmax.xlane.f32.xlu0 %v488
        %v490 = vpop.xlane.xlu0 %489
        %v491 = vsub.f32 %v482, %v490
        %v492 = vmul.f32 %v491, 1.442695
        %v493 = vpow.pop %v492
        %v494 = vsel %vm487, %v493, 0.0
        %495 = vadd.xlane.f32.xlu0 %v494
        %v496 = vpop.xlane.xlu0 %495
        %v497 = vrcp.pop %v496
        %v498 = vmul.f32 %v493, %v497
        %v499 = vpack.c.bf16 %v498, %v498
        %v500 = vld [vmem:[#allocation3] sm:$0xf]
        %v502 = vsel %vm487, %v499, 0
        %vm504 = vcmask 1043456
        %v506 = vsel %vm504, %v500, 0
        %508 = vmatprep.subr.bf16.mxu0 0
        %509 = vmatpush1.bf16.msra.mxu0 %v506
        %510 = vmatprep.subr.bf16.mxu0 0
        %511 = vmatpush1.bf16.msra.mxu0 0
        %512 = vmatprep.subr.bf16.mxu0 0
        %513 = vmatpush1.bf16.msra.mxu0 0
        %514 = vmatprep.subr.bf16.mxu0 0
        %515 = vmatpush1.bf16.msra.mxu0 0
        %516 = vmatprep.subr.bf16.mxu0 0
        %517 = vmatpush1.bf16.msra.mxu0 0
        %518 = vmatprep.subr.bf16.mxu0 0
        %519 = vmatpush1.bf16.msra.mxu0 0
        %520 = vmatprep.subr.bf16.mxu0 0
        %521 = vmatpush1.bf16.msra.mxu0 0
        %522 = vmatprep.subr.bf16.mxu0 0
        %523 = vmatpush1.bf16.msra.mxu0 0
        %524 = vmatprep.subr.bf16.mxu0 0
        %525 = vmatpush1.bf16.msra.mxu0 0
        %526 = vmatprep.subr.bf16.mxu0 0
        %527 = vmatpush1.bf16.msra.mxu0 0
        %528 = vmatprep.subr.bf16.mxu0 0
        %529 = vmatpush1.bf16.msra.mxu0 0
        %530 = vmatprep.subr.bf16.mxu0 0
        %531 = vmatpush1.bf16.msra.mxu0 0
        %532 = vmatprep.subr.bf16.mxu0 0
        %533 = vmatpush1.bf16.msra.mxu0 0
        %534 = vmatprep.subr.bf16.mxu0 0
        %535 = vmatpush1.bf16.msra.mxu0 0
        %536 = vmatprep.subr.bf16.mxu0 0
        %537 = vmatpush1.bf16.msra.mxu0 0
        %538 = vmatprep.subr.bf16.mxu0 0
        %539 = vmatpush1.bf16.msra.mxu0 0
        %540 = vmatprep.mubr.bf16.mxu0 0
        %541 = vmatmul.mubr.bf16.gmra.mrb[0].mxu0 %v502
        %v542 = vpop.f32.mrb[0].mxu0
        %v543 = vadd.f32 0.0, %v542
        %v544 = vpop.f32.mrb[0].mxu0
        %v545 = vpop.f32.mrb[0].mxu0
        %v546 = vpop.f32.mrb[0].mxu0
        %547 = vdwg.mxu0
        %548 = vst.msk [vmem:[%s282] sm:$0xff] %vm395, %v543
        %s549 = sand.u32 %s155, 1
        %s550 = scalar_lea.sflag [#allocation6], %s549
        %s551 = sand.u32 %s155, 1
        %s552 = smul.addr %s551, 8
        %s553 = scalar_lea.vmem [#allocation10], %s552
        // Predicated region
        $region57: #{tpu_custom_call.1} parent=39 // pred_check
          %p554 = pneg %p165
        $region58: #{tpu_custom_call.1} parent=39 // pred_check_branch
          %556 = sbr.rel (%p554) target = $region60
        $region59: #{tpu_custom_call.1} parent=39 // pred_region
          %s558 = ssub.s32 128, 128
          %559 = vsyncadd %s550, %s558
          %s560 = sadd.s32 %s28, %s27
          %s561 = smul.addr %s560, 128
          %s562 = scalar_lea.hbm %s5, %s561
          %s564 = sshll.u32 %s553, 4
          %s565 = int_to_ptr.vmem [resolvable:$true] %s564
          %567 = dma.vmem_to_hbm [thread:$0]  %s565, 128, %s562, %s550
        $region60: #{tpu_custom_call.1} parent=39 // pred_fallthru
          _
      $region40: #{tpu_custom_call.1} parent=5 // pred_fallthru
        _
      %p568 = scmp.le.s32.totalorder 2, %s18
      // Predicated region
      $region61: #{tpu_custom_call.1} parent=5 // pred_check
        %p569 = pneg %p568
      $region62: #{tpu_custom_call.1} parent=5 // pred_check_branch
        %571 = sbr.rel (%p569) target = $region64
      $region63: #{tpu_custom_call.1} parent=5 // pred_region
        %s572 = ssub.s32 %s18, 2
        // Predicated region
        $region65: #{tpu_custom_call.1} parent=63 // pred_check
          %p573 = pneg %p171
        $region66: #{tpu_custom_call.1} parent=63 // pred_check_branch
          %575 = sbr.rel (%p573) target = $region68
        $region67: #{tpu_custom_call.1} parent=63 // pred_region
          %s576 = sand.u32 %s156, 1
          %s577 = scalar_lea.sflag [#allocation6], %s576
          %s578 = sand.u32 %s156, 1
          %s579 = smul.addr %s578, 8
          %s580 = scalar_lea.vmem [#allocation10], %s579
          %581 = dma.done %s577, 128
        $region68: #{tpu_custom_call.1} parent=63 // pred_fallthru
          _
      $region64: #{tpu_custom_call.1} parent=5 // pred_fallthru
        _
    $region6: #{tpu_custom_call.1} parent=1 // loop_footer
      %s22 = sadd.s32 1, %s18
    $region7: #{tpu_custom_call.1} parent=1 // loop_footer_branch
      %17 = sbr.rel target = $region3
    $region8: #{tpu_custom_call.1} parent=1 // loop_exit
      _
    %582 = vsyncpa [#allocation5], 1
    %s583 = scalar_lea.sflag [#allocation5], 1
    %584 = vsyncpa %s583, 1
    %585 = vsyncpa [#allocation8], 1
    %586 = vsyncpa [#allocation6], 1
    %s587 = scalar_lea.sflag [#allocation6], 1
    %588 = vsyncpa %s587, 1

</llo_original>
